<compile_context>
chip_gen: v5e
topology: v5e:2x2
jax: 0.10.0
libtpu: 0.0.40
codegen_flags: <defaults>
</compile_context>

<pallas_src>
import jax
import jax.numpy as jnp
from jax.experimental import pallas as pl
from jax.experimental.pallas import tpu as pltpu

BN_EPS = 1e-5


def _softplus(z):
    # numerically-stable softplus, matches torch.nn.Softplus (beta=1)
    return jnp.maximum(z, 0.0) + jnp.log1p(jnp.exp(-jnp.abs(z)))


def encoder_kernel(x_ref, w1_ref, b1_ref, w2_ref, b2_ref, wh_ref, bh_ref,
                   out_ref, acc_ref):
    k = pl.program_id(1)

    @pl.when(k == 0)
    def _():
        acc_ref[...] = jnp.zeros_like(acc_ref)

    # partial (tb, tk) x (tk, H) product along the vocab axis, f32 accumulation
    acc_ref[...] += jnp.dot(x_ref[...].astype(w1_ref.dtype), w1_ref[...],
                            preferred_element_type=jnp.float32)

    @pl.when(k == pl.num_programs(1) - 1)
    def _():
        # enc: Softplus -> Linear -> Softplus -> Dropout(identity, eval)
        h = _softplus(acc_ref[...] + b1_ref[...])
        h = _softplus(
            jnp.dot(h.astype(w2_ref.dtype), w2_ref[...],
                    preferred_element_type=jnp.float32) + b2_ref[...])

        # fused heads (eval BN folded into wh/bh):
        #   columns [0, T)  -> logtheta_loc
        #   columns [T, 2T) -> logtheta_logvar -> scale = exp(0.5 * lv)
        z = jnp.dot(h.astype(wh_ref.dtype), wh_ref[...],
                    preferred_element_type=jnp.float32) + bh_ref[...]

        t = out_ref.shape[-1] // 2
        if t % 128 == 0:
            # lane-aligned static split: exp only on the logvar half
            out_ref[:, :t] = z[:, :t]
            out_ref[:, t:] = jnp.exp(0.5 * z[:, t:])
        else:
            # sub-vreg split: a single select is cheaper than masked lane ops
            col = jax.lax.broadcasted_iota(jnp.int32, z.shape, 1)
            out_ref[...] = jnp.where(col < t, z, jnp.exp(0.5 * z))


# ---------------------------------------------------------------------------
# host-side helpers
# ---------------------------------------------------------------------------
def _vmem_capacity_bytes():
    try:
        return int(pltpu.get_tpu_info().vmem_capacity_bytes)
    except Exception:
        return 64 << 20  # conservative (v7x per-core)


def _pick_batch_tile(B, batch_tile):
    """Batch tile: multiple of 8, prefers (a) dividing B exactly (no pad copy
    of x), (b) multiples of 16 (bf16 sublane packing), (c) >= 2 grid blocks
    for large B (v7x megacore sharding), (d) as large as allowed."""
    cap = max(8, min(batch_tile, -(-B // 8) * 8))

    def score(t):
        return (B % t == 0,
                t % 16 == 0 or t >= B,
                -(-B // t) >= 2 or B <= 16,
                t)

    return max(range(8, cap + 1, 8), key=score)


def _pick_k_tile(V, H, tb, vmem_limit):
    """Vocab tile: keep W1 whole-resident when it (conservatively, assuming
    double-buffering everywhere) fits the scoped-VMEM budget, else K-tile with
    a 128-multiple tile, preferring one that divides V (no pad of x)."""
    headroom = 8 << 20
    whole = 2 * tb * V * 4 + 2 * V * H * 2   # dbl-buf f32 x tile + bf16 W1
    if V <= 2048 or whole + headroom <= vmem_limit:
        return V
    for tk in (2048, 1024, 512, 256, 128):
        if V % tk == 0:
            return tk
    return 512  # no aligned divisor: pad V (zero pad is exact)


def encoder_forward(x, params, *, batch_tile=256):
    """x: (B, V) float32.  Returns (logtheta_loc, logtheta_scale), each (B, T)."""
    B, V = x.shape
    H = params["w1"].shape[1]
    T = params["wmu"].shape[1]

    # ---- fold eval-mode BatchNorm1d(affine=False) into the head (exact, f32)
    s_mu = jax.lax.rsqrt(params["rv_mu"] + BN_EPS)               # (1, T)
    s_lv = jax.lax.rsqrt(params["rv_lv"] + BN_EPS)
    wmu = params["wmu"] * s_mu                                   # (H, T)
    wlv = params["wlv"] * s_lv
    bmu = (params["bmu"] - params["rm_mu"]) * s_mu               # (1, T)
    blv = (params["blv"] - params["rm_lv"]) * s_lv

    # fuse the two heads -> one lane-dense (H, 2T) matmul
    wh = jnp.concatenate([wmu, wlv], axis=1).astype(jnp.bfloat16)
    bh = jnp.concatenate([bmu, blv], axis=1).astype(jnp.float32)

    w1 = params["w1"].astype(jnp.bfloat16)
    w2 = params["w2"].astype(jnp.bfloat16)
    b1 = params["b1"].astype(jnp.float32)
    b2 = params["b2"].astype(jnp.float32)
    # NOTE: x stays f32; the bf16 cast happens per-tile inside the kernel.

    # ---- generation-aware VMEM limit and tiling -----------------------------
    vmem_limit = int(_vmem_capacity_bytes() * 0.8)

    tb = _pick_batch_tile(B, batch_tile)
    nb = -(-B // tb)
    Bp = nb * tb

    tk = _pick_k_tile(V, H, tb, vmem_limit)
    nk = -(-V // tk)
    Vp = nk * tk

    if Vp != V:
        w1 = jnp.pad(w1, ((0, Vp - V), (0, 0)))          # zero rows: exact
    xp = x
    if Bp != B or Vp != V:
        xp = jnp.pad(x, ((0, Bp - B), (0, Vp - V)))

    # ---- advisory cost ------------------------------------------------------
    flops = 2 * Bp * (Vp * H + H * H + H * 2 * T)
    transcendentals = Bp * (4 * H + 2 * T)
    bytes_accessed = (xp.size * 4
                      + (w1.size + w2.size + wh.size) * 2
                      + (b1.size + b2.size + bh.size) * 4
                      + Bp * 2 * T * 4)

    def build_and_call(single_buffer_weights):
        def const_spec(shape):
            if single_buffer_weights:
                return pl.BlockSpec(shape, lambda i, k: (0, 0),
                                    pipeline_mode=pl.Buffered(1))
            return pl.BlockSpec(shape, lambda i, k: (0, 0))

        if nk == 1 and single_buffer_weights:
            w1_spec = pl.BlockSpec((tk, H), lambda i, k: (k, 0),
                                   pipeline_mode=pl.Buffered(1))
        else:
            w1_spec = pl.BlockSpec((tk, H), lambda i, k: (k, 0))

        return pl.pallas_call(
            encoder_kernel,
            out_shape=jax.ShapeDtypeStruct((Bp, 2 * T), jnp.float32),
            grid_spec=pltpu.PrefetchScalarGridSpec(
                num_scalar_prefetch=0,
                grid=(nb, nk),                        # vocab reduction axis last
                in_specs=[
                    pl.BlockSpec((tb, tk), lambda i, k: (i, k)),   # x tile (f32)
                    w1_spec,                                       # W1 K-tile
                    const_spec((1, H)),                            # b1
                    const_spec((H, H)),                            # W2
                    const_spec((1, H)),                            # b2
                    const_spec((H, 2 * T)),                        # fused heads
                    const_spec((1, 2 * T)),                        # fused bias
                ],
                out_specs=pl.BlockSpec((tb, 2 * T), lambda i, k: (i, 0)),
                scratch_shapes=[pltpu.VMEM((tb, H), jnp.float32)],  # x@W1 acc
            ),
            compiler_params=pltpu.CompilerParams(
                dimension_semantics=("parallel", "arbitrary"),
                vmem_limit_bytes=vmem_limit),
            cost_estimate=pl.CostEstimate(flops=flops,
                                          transcendentals=transcendentals,
                                          bytes_accessed=bytes_accessed),
        )(xp, w1, b1, w2, b2, wh, bh)

    try:
        out = build_and_call(True)
    except Exception:
        # TODO(synk): drop this fallback once pl.Buffered(1) single-buffering
        #             of constant blocks is guaranteed by the deployed jax.
        out = build_and_call(False)

    loc = out[:B, :T]
    scale = out[:B, T:]
    return loc, scale


# ---------------------------------------------------------------------------
# synthetic params + pure-JAX reference (original module's eval semantics)
# ---------------------------------------------------------------------------
def init_params(key, vocab_size, num_topics, hidden):
    """Deterministic synthetic init (weights stored as (in, out)), f32."""
    ks = jax.random.split(key, 8)

    def lin(kw, kb, fan_in, fan_out):
        bound = 1.0 / jnp.sqrt(fan_in)
        w = jax.random.uniform(kw, (fan_in, fan_out), jnp.float32, -bound, bound)
        b = jax.random.uniform(kb, (1, fan_out), jnp.float32, -bound, bound)
        return w, b

    w1, b1 = lin(ks[0], ks[1], vocab_size, hidden)
    w2, b2 = lin(ks[2], ks[3], hidden, hidden)
    wmu, bmu = lin(ks[4], ks[5], hidden, num_topics)
    wlv, blv = lin(ks[6], ks[7], hidden, num_topics)

    zeros = jnp.zeros((1, num_topics), jnp.float32)
    ones = jnp.ones((1, num_topics), jnp.float32)
    return dict(w1=w1, b1=b1, w2=w2, b2=b2,
                wmu=wmu, bmu=bmu, wlv=wlv, blv=blv,
                rm_mu=zeros, rv_mu=ones, rm_lv=zeros, rv_lv=ones)


def reference_forward(x, p):
    sp = lambda z: jnp.maximum(z, 0.0) + jnp.log1p(jnp.exp(-jnp.abs(z)))
    h = sp(x @ p["w1"] + p["b1"])
    h = sp(h @ p["w2"] + p["b2"])
    mu = h @ p["wmu"] + p["bmu"]
    lv = h @ p["wlv"] + p["blv"]
    loc = (mu - p["rm_mu"]) / jnp.sqrt(p["rv_mu"] + BN_EPS)
    lvn = (lv - p["rm_lv"]) / jnp.sqrt(p["rv_lv"] + BN_EPS)
    return loc, jnp.exp(0.5 * lvn)


if __name__ == "__main__":
    B, VOCAB, HIDDEN, TOPICS = 8, 256, 128, 64

    key = jax.random.PRNGKey(0)
    kx, kp = jax.random.split(key)
    # bag-of-words style non-negative values
    x = jax.random.uniform(kx, (B, VOCAB), jnp.float32, 0.0, 3.0)
    params = init_params(kp, VOCAB, TOPICS, HIDDEN)

    loc, scale = jax.block_until_ready(encoder_forward(x, params))

    ref_loc, ref_scale = reference_forward(x, params)
    assert loc.shape == (B, TOPICS) and scale.shape == (B, TOPICS)
    # bf16 matmul operands -> loosened tolerance vs. the pure-f32 reference
    assert jnp.allclose(loc, ref_loc, atol=5e-2, rtol=5e-2)
    assert jnp.allclose(scale, ref_scale, atol=5e-2, rtol=5e-2)
    assert bool(jnp.all(jnp.isfinite(loc))) and bool(jnp.all(scale > 0))

    print("KERNEL_OK")
</pallas_src>

<mosaic_0001>
module attributes {stable_mosaic.version = 11 : i64} {
  func.func @encoder_kernel(%arg0: i32, %arg1: i32, %arg2: memref<8x256xf32, #tpu.memory_space<vmem>>, %arg3: memref<256x128xbf16, #tpu.memory_space<vmem>>, %arg4: memref<1x128xf32, #tpu.memory_space<vmem>>, %arg5: memref<128x128xbf16, #tpu.memory_space<vmem>>, %arg6: memref<1x128xf32, #tpu.memory_space<vmem>>, %arg7: memref<128x128xbf16, #tpu.memory_space<vmem>>, %arg8: memref<1x128xf32, #tpu.memory_space<vmem>>, %arg9: memref<8x128xf32, #tpu.memory_space<vmem>>, %arg10: memref<8x128xf32, #tpu.memory_space<vmem>>) attributes {dimension_semantics = [#tpu.dimension_semantics<parallel>, #tpu.dimension_semantics<arbitrary>], iteration_bounds = array<i64: 1, 1>, scalar_prefetch = 0 : i64, scratch_operands = 1 : i64, tpu.core_type = #tpu.core_type<tc>, window_params = [{transform_indices = @transform_0, window_bounds = array<i64: 8, 256>}, {pipeline_mode = #tpu.pipeline_mode<synchronous>, transform_indices = @transform_1, window_bounds = array<i64: 256, 128>}, {pipeline_mode = #tpu.pipeline_mode<synchronous>, transform_indices = @transform_2, window_bounds = array<i64: 1, 128>}, {pipeline_mode = #tpu.pipeline_mode<synchronous>, transform_indices = @transform_3, window_bounds = array<i64: 128, 128>}, {pipeline_mode = #tpu.pipeline_mode<synchronous>, transform_indices = @transform_4, window_bounds = array<i64: 1, 128>}, {pipeline_mode = #tpu.pipeline_mode<synchronous>, transform_indices = @transform_5, window_bounds = array<i64: 128, 128>}, {pipeline_mode = #tpu.pipeline_mode<synchronous>, transform_indices = @transform_6, window_bounds = array<i64: 1, 128>}, {transform_indices = @transform_7, window_bounds = array<i64: 8, 128>}]} {
    %c0_i32 = arith.constant 0 : i32
    %0 = arith.cmpi eq, %arg1, %c0_i32 : i32
    %1 = arith.extui %0 : i1 to i32
    %c0_i32_0 = arith.constant 0 : i32
    %2 = arith.cmpi ne, %1, %c0_i32_0 : i32
    scf.if %2 {
      %cst_10 = arith.constant 0.000000e+00 : f32
      %13 = vector.broadcast %cst_10 : f32 to vector<8x128xf32>
      %c0_11 = arith.constant 0 : index
      %c0_12 = arith.constant 0 : index
      %14 = vector.load %arg10[%c0_11, %c0_12] : memref<8x128xf32, #tpu.memory_space<vmem>>, vector<8x128xf32>
      tpu.vector_store %arg10[%c0_11, %c0_12], %13 {strides = array<i32>} : memref<8x128xf32, #tpu.memory_space<vmem>>, vector<8x128xf32>,
    } else {
    }
    %c0 = arith.constant 0 : index
    %c0_1 = arith.constant 0 : index
    %3 = vector.load %arg10[%c0, %c0_1] : memref<8x128xf32, #tpu.memory_space<vmem>>, vector<8x128xf32>
    %c0_2 = arith.constant 0 : index
    %c0_3 = arith.constant 0 : index
    %4 = vector.load %arg2[%c0_2, %c0_3] : memref<8x256xf32, #tpu.memory_space<vmem>>, vector<8x256xf32>
    %5 = arith.truncf %4 : vector<8x256xf32> to vector<8x256xbf16>
    %c0_4 = arith.constant 0 : index
    %c0_5 = arith.constant 0 : index
    %6 = vector.load %arg3[%c0_4, %c0_5] : memref<256x128xbf16, #tpu.memory_space<vmem>>, vector<256x128xbf16>
    %cst = arith.constant dense<0.000000e+00> : vector<8x128xf32>
    %7 = tpu.matmul %5, %6, %cst {dimension_numbers = #tpu.dot_dimension_numbers<[1], [0], [0], [1], [0, 0, 1, 1], [], []>} : vector<8x256xbf16>, vector<256x128xbf16>, vector<8x128xf32> -> vector<8x128xf32>
    %8 = arith.addf %3, %7 : vector<8x128xf32>
    %c0_6 = arith.constant 0 : index
    %c0_7 = arith.constant 0 : index
    %9 = vector.load %arg10[%c0_6, %c0_7] : memref<8x128xf32, #tpu.memory_space<vmem>>, vector<8x128xf32>
    tpu.vector_store %arg10[%c0_6, %c0_7], %8 {strides = array<i32>} : memref<8x128xf32, #tpu.memory_space<vmem>>, vector<8x128xf32>,
    %c0_i32_8 = arith.constant 0 : i32
    %10 = arith.cmpi eq, %arg1, %c0_i32_8 : i32
    %11 = arith.extui %10 : i1 to i32
    %c0_i32_9 = arith.constant 0 : i32
    %12 = arith.cmpi ne, %11, %c0_i32_9 : i32
    scf.if %12 {
      %c0_10 = arith.constant 0 : index
      %c0_11 = arith.constant 0 : index
      %13 = vector.load %arg10[%c0_10, %c0_11] : memref<8x128xf32, #tpu.memory_space<vmem>>, vector<8x128xf32>
      %c0_12 = arith.constant 0 : index
      %c0_13 = arith.constant 0 : index
      %14 = vector.load %arg4[%c0_12, %c0_13] : memref<1x128xf32, #tpu.memory_space<vmem>>, vector<1x128xf32>
      %15 = vector.broadcast %14 : vector<1x128xf32> to vector<8x128xf32>
      %16 = arith.addf %13, %15 : vector<8x128xf32>
      %cst_14 = arith.constant 0.000000e+00 : f32
      %17 = vector.broadcast %cst_14 : f32 to vector<8x128xf32>
      %18 = arith.maximumf %16, %17 : vector<8x128xf32>
      %19 = math.absf %16 : vector<8x128xf32>
      %cst_15 = arith.constant 0.000000e+00 : f32
      %20 = vector.broadcast %cst_15 : f32 to vector<8x128xf32>
      %21 = arith.subf %20, %19 : vector<8x128xf32>
      %22 = math.exp %21 : vector<8x128xf32>
      %23 = math.log1p %22 : vector<8x128xf32>
      %24 = arith.addf %18, %23 : vector<8x128xf32>
      %25 = arith.truncf %24 : vector<8x128xf32> to vector<8x128xbf16>
      %c0_16 = arith.constant 0 : index
      %c0_17 = arith.constant 0 : index
      %26 = vector.load %arg5[%c0_16, %c0_17] : memref<128x128xbf16, #tpu.memory_space<vmem>>, vector<128x128xbf16>
      %cst_18 = arith.constant dense<0.000000e+00> : vector<8x128xf32>
      %27 = tpu.matmul %25, %26, %cst_18 {dimension_numbers = #tpu.dot_dimension_numbers<[1], [0], [0], [1], [0, 0, 1, 1], [], []>} : vector<8x128xbf16>, vector<128x128xbf16>, vector<8x128xf32> -> vector<8x128xf32>
      %c0_19 = arith.constant 0 : index
      %c0_20 = arith.constant 0 : index
      %28 = vector.load %arg6[%c0_19, %c0_20] : memref<1x128xf32, #tpu.memory_space<vmem>>, vector<1x128xf32>
      %29 = vector.broadcast %28 : vector<1x128xf32> to vector<8x128xf32>
      %30 = arith.addf %27, %29 : vector<8x128xf32>
      %cst_21 = arith.constant 0.000000e+00 : f32
      %31 = vector.broadcast %cst_21 : f32 to vector<8x128xf32>
      %32 = arith.maximumf %30, %31 : vector<8x128xf32>
      %33 = math.absf %30 : vector<8x128xf32>
      %cst_22 = arith.constant 0.000000e+00 : f32
      %34 = vector.broadcast %cst_22 : f32 to vector<8x128xf32>
      %35 = arith.subf %34, %33 : vector<8x128xf32>
      %36 = math.exp %35 : vector<8x128xf32>
      %37 = math.log1p %36 : vector<8x128xf32>
      %38 = arith.addf %32, %37 : vector<8x128xf32>
      %39 = arith.truncf %38 : vector<8x128xf32> to vector<8x128xbf16>
      %c0_23 = arith.constant 0 : index
      %c0_24 = arith.constant 0 : index
      %40 = vector.load %arg7[%c0_23, %c0_24] : memref<128x128xbf16, #tpu.memory_space<vmem>>, vector<128x128xbf16>
      %cst_25 = arith.constant dense<0.000000e+00> : vector<8x128xf32>
      %41 = tpu.matmul %39, %40, %cst_25 {dimension_numbers = #tpu.dot_dimension_numbers<[1], [0], [0], [1], [0, 0, 1, 1], [], []>} : vector<8x128xbf16>, vector<128x128xbf16>, vector<8x128xf32> -> vector<8x128xf32>
      %c0_26 = arith.constant 0 : index
      %c0_27 = arith.constant 0 : index
      %42 = vector.load %arg8[%c0_26, %c0_27] : memref<1x128xf32, #tpu.memory_space<vmem>>, vector<1x128xf32>
      %43 = vector.broadcast %42 : vector<1x128xf32> to vector<8x128xf32>
      %44 = arith.addf %41, %43 : vector<8x128xf32>
      %45 = tpu.iota {dimensions = array<i32: 1>} : vector<8x128xi32>
      %c64_i32 = arith.constant 64 : i32
      %46 = vector.broadcast %c64_i32 : i32 to vector<8x128xi32>
      %47 = arith.cmpi slt, %45, %46 : vector<8x128xi32>
      %cst_28 = arith.constant 5.000000e-01 : f32
      %48 = vector.broadcast %cst_28 : f32 to vector<8x128xf32>
      %49 = arith.mulf %48, %44 : vector<8x128xf32>
      %50 = math.exp %49 : vector<8x128xf32>
      %51 = arith.select %47, %44, %50 : vector<8x128xi1>, vector<8x128xf32>
      %c0_29 = arith.constant 0 : index
      %c0_30 = arith.constant 0 : index
      %52 = vector.load %arg9[%c0_29, %c0_30] : memref<8x128xf32, #tpu.memory_space<vmem>>, vector<8x128xf32>
      tpu.vector_store %arg9[%c0_29, %c0_30], %51 {strides = array<i32>} : memref<8x128xf32, #tpu.memory_space<vmem>>, vector<8x128xf32>,
    } else {
    }
    return
  }
  func.func @transform_0(%arg0: i32, %arg1: i32) -> (i32, i32) {
    %c0_i32 = arith.constant 0 : i32
    return %arg0, %arg1 : i32, i32
  }
  func.func @transform_1(%arg0: i32, %arg1: i32) -> (i32, i32) {
    %c0_i32 = arith.constant 0 : i32
    %c0_i32_0 = arith.constant 0 : i32
    return %arg1, %c0_i32 : i32, i32
  }
  func.func @transform_2(%arg0: i32, %arg1: i32) -> (i32, i32) {
    %c0_i32 = arith.constant 0 : i32
    %c0_i32_0 = arith.constant 0 : i32
    %c0_i32_1 = arith.constant 0 : i32
    return %c0_i32, %c0_i32_0 : i32, i32
  }
  func.func @transform_3(%arg0: i32, %arg1: i32) -> (i32, i32) {
    %c0_i32 = arith.constant 0 : i32
    %c0_i32_0 = arith.constant 0 : i32
    %c0_i32_1 = arith.constant 0 : i32
    return %c0_i32, %c0_i32_0 : i32, i32
  }
  func.func @transform_4(%arg0: i32, %arg1: i32) -> (i32, i32) {
    %c0_i32 = arith.constant 0 : i32
    %c0_i32_0 = arith.constant 0 : i32
    %c0_i32_1 = arith.constant 0 : i32
    return %c0_i32, %c0_i32_0 : i32, i32
  }
  func.func @transform_5(%arg0: i32, %arg1: i32) -> (i32, i32) {
    %c0_i32 = arith.constant 0 : i32
    %c0_i32_0 = arith.constant 0 : i32
    %c0_i32_1 = arith.constant 0 : i32
    return %c0_i32, %c0_i32_0 : i32, i32
  }
  func.func @transform_6(%arg0: i32, %arg1: i32) -> (i32, i32) {
    %c0_i32 = arith.constant 0 : i32
    %c0_i32_0 = arith.constant 0 : i32
    %c0_i32_1 = arith.constant 0 : i32
    return %c0_i32, %c0_i32_0 : i32, i32
  }
  func.func @transform_7(%arg0: i32, %arg1: i32) -> (i32, i32) {
    %c0_i32 = arith.constant 0 : i32
    %c0_i32_0 = arith.constant 0 : i32
    return %arg0, %c0_i32 : i32, i32
  }
}

module attributes {stable_mosaic.version = 11 : i64} {
  func.func @encoder_kernel(%arg0: i32, %arg1: i32, %arg2: memref<8x256xf32, #tpu.memory_space<vmem>>, %arg3: memref<256x128xbf16, #tpu.memory_space<vmem>>, %arg4: memref<1x128xf32, #tpu.memory_space<vmem>>, %arg5: memref<128x128xbf16, #tpu.memory_space<vmem>>, %arg6: memref<1x128xf32, #tpu.memory_space<vmem>>, %arg7: memref<128x128xbf16, #tpu.memory_space<vmem>>, %arg8: memref<1x128xf32, #tpu.memory_space<vmem>>, %arg9: memref<8x128xf32, #tpu.memory_space<vmem>>, %arg10: memref<8x128xf32, #tpu.memory_space<vmem>>) attributes {dimension_semantics = [#tpu.dimension_semantics<parallel>, #tpu.dimension_semantics<arbitrary>], iteration_bounds = array<i64: 1, 1>, scalar_prefetch = 0 : i64, scratch_operands = 1 : i64, tpu.core_type = #tpu.core_type<tc>, window_params = [{transform_indices = @transform_0, window_bounds = array<i64: 8, 256>}, {transform_indices = @transform_1, window_bounds = array<i64: 256, 128>}, {pipeline_mode = #tpu.pipeline_mode<synchronous>, transform_indices = @transform_2, window_bounds = array<i64: 1, 128>}, {pipeline_mode = #tpu.pipeline_mode<synchronous>, transform_indices = @transform_3, window_bounds = array<i64: 128, 128>}, {pipeline_mode = #tpu.pipeline_mode<synchronous>, transform_indices = @transform_4, window_bounds = array<i64: 1, 128>}, {pipeline_mode = #tpu.pipeline_mode<synchronous>, transform_indices = @transform_5, window_bounds = array<i64: 128, 128>}, {pipeline_mode = #tpu.pipeline_mode<synchronous>, transform_indices = @transform_6, window_bounds = array<i64: 1, 128>}, {transform_indices = @transform_7, window_bounds = array<i64: 8, 128>}]} {
    %c0_i32 = arith.constant 0 : i32
    %0 = arith.cmpi eq, %arg1, %c0_i32 : i32
    %1 = arith.extui %0 : i1 to i32
    %c0_i32_0 = arith.constant 0 : i32
    %2 = arith.cmpi ne, %1, %c0_i32_0 : i32
    scf.if %2 {
      %cst_10 = arith.constant 0.000000e+00 : f32
      %13 = vector.broadcast %cst_10 : f32 to vector<8x128xf32>
      %c0_11 = arith.constant 0 : index
      %c0_12 = arith.constant 0 : index
      %14 = vector.load %arg10[%c0_11, %c0_12] : memref<8x128xf32, #tpu.memory_space<vmem>>, vector<8x128xf32>
      tpu.vector_store %arg10[%c0_11, %c0_12], %13 {strides = array<i32>} : memref<8x128xf32, #tpu.memory_space<vmem>>, vector<8x128xf32>,
    } else {
    }
    %c0 = arith.constant 0 : index
    %c0_1 = arith.constant 0 : index
    %3 = vector.load %arg10[%c0, %c0_1] : memref<8x128xf32, #tpu.memory_space<vmem>>, vector<8x128xf32>
    %c0_2 = arith.constant 0 : index
    %c0_3 = arith.constant 0 : index
    %4 = vector.load %arg2[%c0_2, %c0_3] : memref<8x256xf32, #tpu.memory_space<vmem>>, vector<8x256xf32>
    %5 = arith.truncf %4 : vector<8x256xf32> to vector<8x256xbf16>
    %c0_4 = arith.constant 0 : index
    %c0_5 = arith.constant 0 : index
    %6 = vector.load %arg3[%c0_4, %c0_5] : memref<256x128xbf16, #tpu.memory_space<vmem>>, vector<256x128xbf16>
    %cst = arith.constant dense<0.000000e+00> : vector<8x128xf32>
    %7 = tpu.matmul %5, %6, %cst {dimension_numbers = #tpu.dot_dimension_numbers<[1], [0], [0], [1], [0, 0, 1, 1], [], []>} : vector<8x256xbf16>, vector<256x128xbf16>, vector<8x128xf32> -> vector<8x128xf32>
    %8 = arith.addf %3, %7 : vector<8x128xf32>
    %c0_6 = arith.constant 0 : index
    %c0_7 = arith.constant 0 : index
    %9 = vector.load %arg10[%c0_6, %c0_7] : memref<8x128xf32, #tpu.memory_space<vmem>>, vector<8x128xf32>
    tpu.vector_store %arg10[%c0_6, %c0_7], %8 {strides = array<i32>} : memref<8x128xf32, #tpu.memory_space<vmem>>, vector<8x128xf32>,
    %c0_i32_8 = arith.constant 0 : i32
    %10 = arith.cmpi eq, %arg1, %c0_i32_8 : i32
    %11 = arith.extui %10 : i1 to i32
    %c0_i32_9 = arith.constant 0 : i32
    %12 = arith.cmpi ne, %11, %c0_i32_9 : i32
    scf.if %12 {
      %c0_10 = arith.constant 0 : index
      %c0_11 = arith.constant 0 : index
      %13 = vector.load %arg10[%c0_10, %c0_11] : memref<8x128xf32, #tpu.memory_space<vmem>>, vector<8x128xf32>
      %c0_12 = arith.constant 0 : index
      %c0_13 = arith.constant 0 : index
      %14 = vector.load %arg4[%c0_12, %c0_13] : memref<1x128xf32, #tpu.memory_space<vmem>>, vector<1x128xf32>
      %15 = vector.broadcast %14 : vector<1x128xf32> to vector<8x128xf32>
      %16 = arith.addf %13, %15 : vector<8x128xf32>
      %cst_14 = arith.constant 0.000000e+00 : f32
      %17 = vector.broadcast %cst_14 : f32 to vector<8x128xf32>
      %18 = arith.maximumf %16, %17 : vector<8x128xf32>
      %19 = math.absf %16 : vector<8x128xf32>
      %cst_15 = arith.constant 0.000000e+00 : f32
      %20 = vector.broadcast %cst_15 : f32 to vector<8x128xf32>
      %21 = arith.subf %20, %19 : vector<8x128xf32>
      %22 = math.exp %21 : vector<8x128xf32>
      %23 = math.log1p %22 : vector<8x128xf32>
      %24 = arith.addf %18, %23 : vector<8x128xf32>
      %25 = arith.truncf %24 : vector<8x128xf32> to vector<8x128xbf16>
      %c0_16 = arith.constant 0 : index
      %c0_17 = arith.constant 0 : index
      %26 = vector.load %arg5[%c0_16, %c0_17] : memref<128x128xbf16, #tpu.memory_space<vmem>>, vector<128x128xbf16>
      %cst_18 = arith.constant dense<0.000000e+00> : vector<8x128xf32>
      %27 = tpu.matmul %25, %26, %cst_18 {dimension_numbers = #tpu.dot_dimension_numbers<[1], [0], [0], [1], [0, 0, 1, 1], [], []>} : vector<8x128xbf16>, vector<128x128xbf16>, vector<8x128xf32> -> vector<8x128xf32>
      %c0_19 = arith.constant 0 : index
      %c0_20 = arith.constant 0 : index
      %28 = vector.load %arg6[%c0_19, %c0_20] : memref<1x128xf32, #tpu.memory_space<vmem>>, vector<1x128xf32>
      %29 = vector.broadcast %28 : vector<1x128xf32> to vector<8x128xf32>
      %30 = arith.addf %27, %29 : vector<8x128xf32>
      %cst_21 = arith.constant 0.000000e+00 : f32
      %31 = vector.broadcast %cst_21 : f32 to vector<8x128xf32>
      %32 = arith.maximumf %30, %31 : vector<8x128xf32>
      %33 = math.absf %30 : vector<8x128xf32>
      %cst_22 = arith.constant 0.000000e+00 : f32
      %34 = vector.broadcast %cst_22 : f32 to vector<8x128xf32>
      %35 = arith.subf %34, %33 : vector<8x128xf32>
      %36 = math.exp %35 : vector<8x128xf32>
      %37 = math.log1p %36 : vector<8x128xf32>
      %38 = arith.addf %32, %37 : vector<8x128xf32>
      %39 = arith.truncf %38 : vector<8x128xf32> to vector<8x128xbf16>
      %c0_23 = arith.constant 0 : index
      %c0_24 = arith.constant 0 : index
      %40 = vector.load %arg7[%c0_23, %c0_24] : memref<128x128xbf16, #tpu.memory_space<vmem>>, vector<128x128xbf16>
      %cst_25 = arith.constant dense<0.000000e+00> : vector<8x128xf32>
      %41 = tpu.matmul %39, %40, %cst_25 {dimension_numbers = #tpu.dot_dimension_numbers<[1], [0], [0], [1], [0, 0, 1, 1], [], []>} : vector<8x128xbf16>, vector<128x128xbf16>, vector<8x128xf32> -> vector<8x128xf32>
      %c0_26 = arith.constant 0 : index
      %c0_27 = arith.constant 0 : index
      %42 = vector.load %arg8[%c0_26, %c0_27] : memref<1x128xf32, #tpu.memory_space<vmem>>, vector<1x128xf32>
      %43 = vector.broadcast %42 : vector<1x128xf32> to vector<8x128xf32>
      %44 = arith.addf %41, %43 : vector<8x128xf32>
      %45 = tpu.iota {dimensions = array<i32: 1>} : vector<8x128xi32>
      %c64_i32 = arith.constant 64 : i32
      %46 = vector.broadcast %c64_i32 : i32 to vector<8x128xi32>
      %47 = arith.cmpi slt, %45, %46 : vector<8x128xi32>
      %cst_28 = arith.constant 5.000000e-01 : f32
      %48 = vector.broadcast %cst_28 : f32 to vector<8x128xf32>
      %49 = arith.mulf %48, %44 : vector<8x128xf32>
      %50 = math.exp %49 : vector<8x128xf32>
      %51 = arith.select %47, %44, %50 : vector<8x128xi1>, vector<8x128xf32>
      %c0_29 = arith.constant 0 : index
      %c0_30 = arith.constant 0 : index
      %52 = vector.load %arg9[%c0_29, %c0_30] : memref<8x128xf32, #tpu.memory_space<vmem>>, vector<8x128xf32>
      tpu.vector_store %arg9[%c0_29, %c0_30], %51 {strides = array<i32>} : memref<8x128xf32, #tpu.memory_space<vmem>>, vector<8x128xf32>,
    } else {
    }
    return
  }
  func.func @transform_0(%arg0: i32, %arg1: i32) -> (i32, i32) {
    %c0_i32 = arith.constant 0 : i32
    return %arg0, %arg1 : i32, i32
  }
  func.func @transform_1(%arg0: i32, %arg1: i32) -> (i32, i32) {
    %c0_i32 = arith.constant 0 : i32
    %c0_i32_0 = arith.constant 0 : i32
    return %arg1, %c0_i32 : i32, i32
  }
  func.func @transform_2(%arg0: i32, %arg1: i32) -> (i32, i32) {
    %c0_i32 = arith.constant 0 : i32
    %c0_i32_0 = arith.constant 0 : i32
    %c0_i32_1 = arith.constant 0 : i32
    return %c0_i32, %c0_i32_0 : i32, i32
  }
  func.func @transform_3(%arg0: i32, %arg1: i32) -> (i32, i32) {
    %c0_i32 = arith.constant 0 : i32
    %c0_i32_0 = arith.constant 0 : i32
    %c0_i32_1 = arith.constant 0 : i32
    return %c0_i32, %c0_i32_0 : i32, i32
  }
  func.func @transform_4(%arg0: i32, %arg1: i32) -> (i32, i32) {
    %c0_i32 = arith.constant 0 : i32
    %c0_i32_0 = arith.constant 0 : i32
    %c0_i32_1 = arith.constant 0 : i32
    return %c0_i32, %c0_i32_0 : i32, i32
  }
  func.func @transform_5(%arg0: i32, %arg1: i32) -> (i32, i32) {
    %c0_i32 = arith.constant 0 : i32
    %c0_i32_0 = arith.constant 0 : i32
    %c0_i32_1 = arith.constant 0 : i32
    return %c0_i32, %c0_i32_0 : i32, i32
  }
  func.func @transform_6(%arg0: i32, %arg1: i32) -> (i32, i32) {
    %c0_i32 = arith.constant 0 : i32
    %c0_i32_0 = arith.constant 0 : i32
    %c0_i32_1 = arith.constant 0 : i32
    return %c0_i32, %c0_i32_0 : i32, i32
  }
  func.func @transform_7(%arg0: i32, %arg1: i32) -> (i32, i32) {
    %c0_i32 = arith.constant 0 : i32
    %c0_i32_0 = arith.constant 0 : i32
    return %arg0, %c0_i32 : i32, i32
  }
}

</mosaic_0001>

<llo_original>
// kernel: tpu_custom_call.1
$region0: #{tpu_custom_call.1}
  #allocation0 [shape = 'u32[]', space=smem, size = 0x4, offset = 0x4, fixed_abs, tag = 'smem constant byte address 0x4 - core index']
  #allocation1 [shape = 'u32[72,128]{1,0:T(1,128)}', space=vmem, size = 0x9000, scoped, tag = 'internal scratch']
  #allocation2 [shape = 'f32[8,128]{1,0:T(8,128)}', space=vmem, size = 0x1000, scoped, tag = 'scratch operand']
  %s0 = inlined_call_operand.hbm [shape: f32[8,256], index: 0, kind: input, shape index: {}]
  %s1 = inlined_call_operand.hbm [shape: bf16[256,128], index: 1, kind: input, shape index: {}]
  %s2 = inlined_call_operand.vmem [shape: f32[1,128], index: 2, kind: input, shape index: {}]
  %s3 = inlined_call_operand.hbm [shape: bf16[128,128], index: 3, kind: input, shape index: {}]
  %s4 = inlined_call_operand.vmem [shape: f32[1,128], index: 4, kind: input, shape index: {}]
  %s5 = inlined_call_operand.hbm [shape: bf16[128,128], index: 5, kind: input, shape index: {}]
  %s6 = inlined_call_operand.vmem [shape: f32[1,128], index: 6, kind: input, shape index: {}]
  %s7 = inlined_call_operand.hbm [shape: f32[8,128], index: 7, kind: output, shape index: {}]
  %s8 = sld [smem:[#allocation0]]
  $region62: #{tpu_custom_call.1} parent=0
    _
  %s10 = ssub.s32 1, %s8
  %s11 = scalar_select 0, %s10, %s8
  $region1: #{tpu_custom_call.1} parent=0
    #allocation3 [shape = 'u8[8192]{0}', space=vmem, size = 0x2000, scoped, tag = 'input window, operand 0, single buffered']
    #allocation4 [shape = 's32[1]{0}', space=sflag, size = 0x4, scoped, tag = 'scoped memory for tpu_custom_call.1']
    #allocation5 [shape = 's32[1]{0}', space=sflag, size = 0x4, scoped, tag = 'scoped memory for tpu_custom_call.1']
    #allocation6 [shape = 'u8[65536]{0}', space=vmem, size = 0x10000, scoped, tag = 'input window, operand 1, single buffered']
    #allocation7 [shape = 's32[1]{0}', space=sflag, size = 0x4, scoped, tag = 'scoped memory for tpu_custom_call.1']
    #allocation8 [shape = 'u8[32768]{0}', space=vmem, size = 0x8000, scoped, tag = 'input window, operand 3, single buffered']
    #allocation9 [shape = 'u8[32768]{0}', space=vmem, size = 0x8000, scoped, tag = 'input window, operand 5, single buffered']
    #allocation10 [shape = 's32[1]{0}', space=sflag, size = 0x4, scoped, tag = 'scoped memory for tpu_custom_call.1']
    #allocation11 [shape = 'u8[4096]{0}', space=vmem, size = 0x1000, scoped, tag = 'output window, operand 0, single buffered']
    %12 = vsyncpa [#allocation4], 0
    %13 = vsyncpa [#allocation7], 0
    %14 = vsyncpa [#allocation10], 0
    %15 = vsyncpa [#allocation5], 0
    // Predicated region
    $region2: #{tpu_custom_call.1} parent=1 // pred_check
      _
    $region3: #{tpu_custom_call.1} parent=1 // pred_check_branch
      %17 = sbr.rel (0) target = $region5
    $region4: #{tpu_custom_call.1} parent=1 // pred_region
      %19 = vsyncadd [#allocation4], 0
      %s21 = sshll.u32 %s0, 4
      %s22 = int_to_ptr.hbm [resolvable:$true] %s21
      %s23 = sshll.u32 [#allocation3], 4
      %s24 = int_to_ptr.vmem [resolvable:$true] %s23
      %26 = dma.hbm_to_vmem [thread:$0]  %s22, 256, %s24, [#allocation4]
    $region5: #{tpu_custom_call.1} parent=1 // pred_fallthru
      _
    // Predicated region
    $region6: #{tpu_custom_call.1} parent=1 // pred_check
      _
    $region7: #{tpu_custom_call.1} parent=1 // pred_check_branch
      %28 = sbr.rel (0) target = $region9
    $region8: #{tpu_custom_call.1} parent=1 // pred_region
      %30 = vsyncadd [#allocation7], 0
      %s31 = sshll.u32 %s1, 4
      %s32 = int_to_ptr.hbm [resolvable:$true] %s31
      %s33 = sshll.u32 [#allocation6], 4
      %s34 = int_to_ptr.vmem [resolvable:$true] %s33
      %39 = dma.hbm_to_vmem [thread:$0]  %s32, 2048, %s34, [#allocation7], 64, 64, 4
    $region9: #{tpu_custom_call.1} parent=1 // pred_fallthru
      _
    // Predicated region
    $region10: #{tpu_custom_call.1} parent=1 // pred_check
      _
    $region11: #{tpu_custom_call.1} parent=1 // pred_check_branch
      %41 = sbr.rel (0) target = $region13
    $region12: #{tpu_custom_call.1} parent=1 // pred_region
      _
    $region13: #{tpu_custom_call.1} parent=1 // pred_fallthru
      _
    // Predicated region
    $region14: #{tpu_custom_call.1} parent=1 // pred_check
      _
    $region15: #{tpu_custom_call.1} parent=1 // pred_check_branch
      %43 = sbr.rel (0) target = $region17
    $region16: #{tpu_custom_call.1} parent=1 // pred_region
      %45 = vsyncadd [#allocation7], 0
      %s46 = sshll.u32 %s3, 4
      %s47 = int_to_ptr.hbm [resolvable:$true] %s46
      %s48 = sshll.u32 [#allocation8], 4
      %s49 = int_to_ptr.vmem [resolvable:$true] %s48
      %54 = dma.hbm_to_vmem [thread:$0]  %s47, 1024, %s49, [#allocation7], 64, 64, 4
    $region17: #{tpu_custom_call.1} parent=1 // pred_fallthru
      _
    // Predicated region
    $region18: #{tpu_custom_call.1} parent=1 // pred_check
      _
    $region19: #{tpu_custom_call.1} parent=1 // pred_check_branch
      %56 = sbr.rel (0) target = $region21
    $region20: #{tpu_custom_call.1} parent=1 // pred_region
      _
    $region21: #{tpu_custom_call.1} parent=1 // pred_fallthru
      _
    // Predicated region
    $region22: #{tpu_custom_call.1} parent=1 // pred_check
      _
    $region23: #{tpu_custom_call.1} parent=1 // pred_check_branch
      %58 = sbr.rel (0) target = $region25
    $region24: #{tpu_custom_call.1} parent=1 // pred_region
      %60 = vsyncadd [#allocation10], 0
      %s61 = sshll.u32 %s5, 4
      %s62 = int_to_ptr.hbm [resolvable:$true] %s61
      %s63 = sshll.u32 [#allocation9], 4
      %s64 = int_to_ptr.vmem [resolvable:$true] %s63
      %69 = dma.hbm_to_vmem [thread:$0]  %s62, 1024, %s64, [#allocation10], 64, 64, 4
    $region25: #{tpu_custom_call.1} parent=1 // pred_fallthru
      _
    // Predicated region
    $region26: #{tpu_custom_call.1} parent=1 // pred_check
      _
    $region27: #{tpu_custom_call.1} parent=1 // pred_check_branch
      %71 = sbr.rel (0) target = $region29
    $region28: #{tpu_custom_call.1} parent=1 // pred_region
      _
    $region29: #{tpu_custom_call.1} parent=1 // pred_fallthru
      _
    // Predicated region
    $region30: #{tpu_custom_call.1} parent=1 // pred_check
      _
    $region31: #{tpu_custom_call.1} parent=1 // pred_check_branch
      %73 = sbr.rel (0) target = $region33
    $region32: #{tpu_custom_call.1} parent=1 // pred_region
      %75 = dma.done [#allocation4], 256
    $region33: #{tpu_custom_call.1} parent=1 // pred_fallthru
      _
    // Predicated region
    $region34: #{tpu_custom_call.1} parent=1 // pred_check
      _
    $region35: #{tpu_custom_call.1} parent=1 // pred_check_branch
      %77 = sbr.rel (0) target = $region37
    $region36: #{tpu_custom_call.1} parent=1 // pred_region
      %79 = dma.done [#allocation7], 2048
    $region37: #{tpu_custom_call.1} parent=1 // pred_fallthru
      _
    // Predicated region
    $region38: #{tpu_custom_call.1} parent=1 // pred_check
      _
    $region39: #{tpu_custom_call.1} parent=1 // pred_check_branch
      %81 = sbr.rel (0) target = $region41
    $region40: #{tpu_custom_call.1} parent=1 // pred_region
      %83 = dma.done [#allocation7], 1024
    $region41: #{tpu_custom_call.1} parent=1 // pred_fallthru
      _
    // Predicated region
    $region42: #{tpu_custom_call.1} parent=1 // pred_check
      _
    $region43: #{tpu_custom_call.1} parent=1 // pred_check_branch
      %85 = sbr.rel (0) target = $region45
    $region44: #{tpu_custom_call.1} parent=1 // pred_region
      %87 = dma.done [#allocation10], 1024
    $region45: #{tpu_custom_call.1} parent=1 // pred_fallthru
      _
    %p88 = scmp.eq.s32.totalorder 0, 0
    // Predicated region
    $region46: #{tpu_custom_call.1} parent=1 // pred_check
      %p89 = pneg %p88
    $region47: #{tpu_custom_call.1} parent=1 // pred_check_branch
      %91 = sbr.rel (%p89) target = $region49
    $region48: #{tpu_custom_call.1} parent=1 // pred_region
      %92 = vst [vmem:[#allocation2] sm:$0xff] 0.0
    $region49: #{tpu_custom_call.1} parent=1 // pred_fallthru
      _
    %v93 = vld [vmem:[#allocation2] sm:$0xff]
    %v94 = vld [vmem:[#allocation3] sm:$0xff]
    %v95 = vld [vmem:[#allocation3 + $0x8] sm:$0xff]
    %v96 = vpack.c.bf16 %v94, %v94
    %v97 = vpack.c.bf16 %v95, %v95
    %v98 = vld [vmem:[#allocation6] sm:$0xf]
    %v99 = vld [vmem:[#allocation6 + $0x4] sm:$0xf]
    %v100 = vld [vmem:[#allocation6 + $0x8] sm:$0xf]
    %v101 = vld [vmem:[#allocation6 + $0xc] sm:$0xf]
    %v102 = vld [vmem:[#allocation6 + $0x10] sm:$0xf]
    %v103 = vld [vmem:[#allocation6 + $0x14] sm:$0xf]
    %v104 = vld [vmem:[#allocation6 + $0x18] sm:$0xf]
    %v105 = vld [vmem:[#allocation6 + $0x1c] sm:$0xf]
    %v106 = vld [vmem:[#allocation6 + $0x20] sm:$0xf]
    %v107 = vld [vmem:[#allocation6 + $0x24] sm:$0xf]
    %v108 = vld [vmem:[#allocation6 + $0x28] sm:$0xf]
    %v109 = vld [vmem:[#allocation6 + $0x2c] sm:$0xf]
    %v110 = vld [vmem:[#allocation6 + $0x30] sm:$0xf]
    %v111 = vld [vmem:[#allocation6 + $0x34] sm:$0xf]
    %v112 = vld [vmem:[#allocation6 + $0x38] sm:$0xf]
    %v113 = vld [vmem:[#allocation6 + $0x3c] sm:$0xf]
    %v114 = vld [vmem:[#allocation6 + $0x40] sm:$0xf]
    %v115 = vld [vmem:[#allocation6 + $0x44] sm:$0xf]
    %v116 = vld [vmem:[#allocation6 + $0x48] sm:$0xf]
    %v117 = vld [vmem:[#allocation6 + $0x4c] sm:$0xf]
    %v118 = vld [vmem:[#allocation6 + $0x50] sm:$0xf]
    %v119 = vld [vmem:[#allocation6 + $0x54] sm:$0xf]
    %v120 = vld [vmem:[#allocation6 + $0x58] sm:$0xf]
    %v121 = vld [vmem:[#allocation6 + $0x5c] sm:$0xf]
    %v122 = vld [vmem:[#allocation6 + $0x60] sm:$0xf]
    %v123 = vld [vmem:[#allocation6 + $0x64] sm:$0xf]
    %v124 = vld [vmem:[#allocation6 + $0x68] sm:$0xf]
    %v125 = vld [vmem:[#allocation6 + $0x6c] sm:$0xf]
    %v126 = vld [vmem:[#allocation6 + $0x70] sm:$0xf]
    %v127 = vld [vmem:[#allocation6 + $0x74] sm:$0xf]
    %v128 = vld [vmem:[#allocation6 + $0x78] sm:$0xf]
    %v129 = vld [vmem:[#allocation6 + $0x7c] sm:$0xf]
    %v162 = vunpack.c.l.b16 %v98
    %v163 = vunpack.c.l.b16 %v99
    %v164 = vunpack.c.l.b16 %v100
    %v165 = vunpack.c.l.b16 %v101
    %v166 = vunpack.c.l.b16 %v102
    %v167 = vunpack.c.l.b16 %v103
    %v168 = vunpack.c.l.b16 %v104
    %v169 = vunpack.c.l.b16 %v105
    %v170 = vunpack.c.l.b16 %v106
    %v171 = vunpack.c.l.b16 %v107
    %v172 = vunpack.c.l.b16 %v108
    %v173 = vunpack.c.l.b16 %v109
    %v174 = vunpack.c.l.b16 %v110
    %v175 = vunpack.c.l.b16 %v111
    %v176 = vunpack.c.l.b16 %v112
    %v177 = vunpack.c.l.b16 %v113
    %v178 = vunpack.c.l.b16 %v114
    %v179 = vunpack.c.l.b16 %v115
    %v180 = vunpack.c.l.b16 %v116
    %v181 = vunpack.c.l.b16 %v117
    %v182 = vunpack.c.l.b16 %v118
    %v183 = vunpack.c.l.b16 %v119
    %v184 = vunpack.c.l.b16 %v120
    %v185 = vunpack.c.l.b16 %v121
    %v186 = vunpack.c.l.b16 %v122
    %v187 = vunpack.c.l.b16 %v123
    %v188 = vunpack.c.l.b16 %v124
    %v189 = vunpack.c.l.b16 %v125
    %v190 = vunpack.c.l.b16 %v126
    %v191 = vunpack.c.l.b16 %v127
    %v192 = vunpack.c.l.b16 %v128
    %v193 = vunpack.c.l.b16 %v129
    %v194 = vpack.c.b16 %v163, %v162
    %v195 = vpack.c.b16 %v165, %v164
    %v196 = vpack.c.b16 %v167, %v166
    %v197 = vpack.c.b16 %v169, %v168
    %v198 = vpack.c.b16 %v171, %v170
    %v199 = vpack.c.b16 %v173, %v172
    %v200 = vpack.c.b16 %v175, %v174
    %v201 = vpack.c.b16 %v177, %v176
    %v202 = vpack.c.b16 %v179, %v178
    %v203 = vpack.c.b16 %v181, %v180
    %v204 = vpack.c.b16 %v183, %v182
    %v205 = vpack.c.b16 %v185, %v184
    %v206 = vpack.c.b16 %v187, %v186
    %v207 = vpack.c.b16 %v189, %v188
    %v208 = vpack.c.b16 %v191, %v190
    %v209 = vpack.c.b16 %v193, %v192
    %226 = vmatpush.bf16.msra.mxu0 %v201
    %227 = vmatpush.bf16.msra.mxu0 %v200
    %228 = vmatpush.bf16.msra.mxu0 %v199
    %229 = vmatpush.bf16.msra.mxu0 %v198
    %230 = vmatpush.bf16.msra.mxu0 %v197
    %231 = vmatpush.bf16.msra.mxu0 %v196
    %232 = vmatpush.bf16.msra.mxu0 %v195
    %233 = vmatpush.bf16.msra.mxu0 %v194
    %234 = vmatmul.bf16.gmra.mxu0 %v96
    %v235 = vpop.f32.mrf.mxu0
    %v236 = vadd.f32 0.0, %v235
    %v237 = vpop.f32.mrf.mxu0
    %238 = vdwg.mxu0
    %239 = vmatpush.bf16.msra.mxu0 %v209
    %240 = vmatpush.bf16.msra.mxu0 %v208
    %241 = vmatpush.bf16.msra.mxu0 %v207
    %242 = vmatpush.bf16.msra.mxu0 %v206
    %243 = vmatpush.bf16.msra.mxu0 %v205
    %244 = vmatpush.bf16.msra.mxu0 %v204
    %245 = vmatpush.bf16.msra.mxu0 %v203
    %246 = vmatpush.bf16.msra.mxu0 %v202
    %247 = vmatmul.bf16.gmra.mxu0 %v97
    %v248 = vpop.f32.mrf.mxu0
    %v249 = vadd.f32 %v236, %v248
    %v250 = vpop.f32.mrf.mxu0
    %251 = vdwg.mxu0
    %v252 = vadd.f32 %v93, %v249
    %253 = vst [vmem:[#allocation2] sm:$0xff] %v252
    // Predicated region
    $region50: #{tpu_custom_call.1} parent=1 // pred_check
      %p254 = pneg %p88
    $region51: #{tpu_custom_call.1} parent=1 // pred_check_branch
      %256 = sbr.rel (%p254) target = $region53
    $region52: #{tpu_custom_call.1} parent=1 // pred_region
      %v257 = vld [vmem:[#allocation2] sm:$0xff]
      %v258 = vld [vmem:[%s2] sm:$0x1]
      %v260 = vperm.slane %v258, 0
      %v262 = vadd.f32 %v257, %v260
      %v263 = vmax.f32 %v262, 0.0
      %v264 = vand.u32 2147483647, %v262
      %v265 = vsub.f32 0.0, %v264
      %v266 = vmul.f32 %v265, 1.442695
      %v267 = vpow.pop %v266
      %v268 = vadd.f32 %v267, 1.0
      %v269 = vlog2.pop %v268
      %v270 = vmul.f32 %v269, 0.6931472
      %v271 = vmul.f32 -0.5, %v267
      %v272 = vadd.f32 %v271, 1.0
      %v273 = vmul.f32 %v272, %v267
      %v274 = vand.u32 2147483647, %v267
      %vm275 = vcmp.lt.f32.partialorder %v274, 0.0004427343
      %v276 = vsel %vm275, %v273, %v270
      %v277 = vadd.f32 %v263, %v276
      %v278 = vpack.c.bf16 %v277, %v277
      %v279 = vld [vmem:[#allocation8] sm:$0xf]
      %v280 = vld [vmem:[#allocation8 + $0x4] sm:$0xf]
      %v281 = vld [vmem:[#allocation8 + $0x8] sm:$0xf]
      %v282 = vld [vmem:[#allocation8 + $0xc] sm:$0xf]
      %v283 = vld [vmem:[#allocation8 + $0x10] sm:$0xf]
      %v284 = vld [vmem:[#allocation8 + $0x14] sm:$0xf]
      %v285 = vld [vmem:[#allocation8 + $0x18] sm:$0xf]
      %v286 = vld [vmem:[#allocation8 + $0x1c] sm:$0xf]
      %v287 = vld [vmem:[#allocation8 + $0x20] sm:$0xf]
      %v288 = vld [vmem:[#allocation8 + $0x24] sm:$0xf]
      %v289 = vld [vmem:[#allocation8 + $0x28] sm:$0xf]
      %v290 = vld [vmem:[#allocation8 + $0x2c] sm:$0xf]
      %v291 = vld [vmem:[#allocation8 + $0x30] sm:$0xf]
      %v292 = vld [vmem:[#allocation8 + $0x34] sm:$0xf]
      %v293 = vld [vmem:[#allocation8 + $0x38] sm:$0xf]
      %v294 = vld [vmem:[#allocation8 + $0x3c] sm:$0xf]
      %v295 = vld [vmem:[%s4] sm:$0x1]
      %v297 = vperm.slane %v295, 0
      %v315 = vunpack.c.l.b16 %v279
      %v316 = vunpack.c.l.b16 %v280
      %v317 = vunpack.c.l.b16 %v281
      %v318 = vunpack.c.l.b16 %v282
      %v319 = vunpack.c.l.b16 %v283
      %v320 = vunpack.c.l.b16 %v284
      %v321 = vunpack.c.l.b16 %v285
      %v322 = vunpack.c.l.b16 %v286
      %v323 = vunpack.c.l.b16 %v287
      %v324 = vunpack.c.l.b16 %v288
      %v325 = vunpack.c.l.b16 %v289
      %v326 = vunpack.c.l.b16 %v290
      %v327 = vunpack.c.l.b16 %v291
      %v328 = vunpack.c.l.b16 %v292
      %v329 = vunpack.c.l.b16 %v293
      %v330 = vunpack.c.l.b16 %v294
      %v331 = vpack.c.b16 %v316, %v315
      %v332 = vpack.c.b16 %v318, %v317
      %v333 = vpack.c.b16 %v320, %v319
      %v334 = vpack.c.b16 %v322, %v321
      %v335 = vpack.c.b16 %v324, %v323
      %v336 = vpack.c.b16 %v326, %v325
      %v337 = vpack.c.b16 %v328, %v327
      %v338 = vpack.c.b16 %v330, %v329
      %347 = vmatpush.bf16.msra.mxu0 %v338
      %348 = vmatpush.bf16.msra.mxu0 %v337
      %349 = vmatpush.bf16.msra.mxu0 %v336
      %350 = vmatpush.bf16.msra.mxu0 %v335
      %351 = vmatpush.bf16.msra.mxu0 %v334
      %352 = vmatpush.bf16.msra.mxu0 %v333
      %353 = vmatpush.bf16.msra.mxu0 %v332
      %354 = vmatpush.bf16.msra.mxu0 %v331
      %355 = vmatmul.bf16.gmra.mxu0 %v278
      %v356 = vpop.f32.mrf.mxu0
      %v357 = vadd.f32 %v297, %v356
      %v358 = vpop.f32.mrf.mxu0
      %359 = vdwg.mxu0
      %v360 = vmax.f32 %v357, 0.0
      %v361 = vand.u32 2147483647, %v357
      %v362 = vsub.f32 0.0, %v361
      %v363 = vmul.f32 %v362, 1.442695
      %v364 = vpow.pop %v363
      %v365 = vadd.f32 %v364, 1.0
      %v366 = vlog2.pop %v365
      %v367 = vmul.f32 %v366, 0.6931472
      %v368 = vmul.f32 -0.5, %v364
      %v369 = vadd.f32 %v368, 1.0
      %v370 = vmul.f32 %v369, %v364
      %v371 = vand.u32 2147483647, %v364
      %vm372 = vcmp.lt.f32.partialorder %v371, 0.0004427343
      %v373 = vsel %vm372, %v370, %v367
      %v374 = vadd.f32 %v360, %v373
      %v375 = vpack.c.bf16 %v374, %v374
      %v376 = vld [vmem:[#allocation9] sm:$0xf]
      %v377 = vld [vmem:[#allocation9 + $0x4] sm:$0xf]
      %v378 = vld [vmem:[#allocation9 + $0x8] sm:$0xf]
      %v379 = vld [vmem:[#allocation9 + $0xc] sm:$0xf]
      %v380 = vld [vmem:[#allocation9 + $0x10] sm:$0xf]
      %v381 = vld [vmem:[#allocation9 + $0x14] sm:$0xf]
      %v382 = vld [vmem:[#allocation9 + $0x18] sm:$0xf]
      %v383 = vld [vmem:[#allocation9 + $0x1c] sm:$0xf]
      %v384 = vld [vmem:[#allocation9 + $0x20] sm:$0xf]
      %v385 = vld [vmem:[#allocation9 + $0x24] sm:$0xf]
      %v386 = vld [vmem:[#allocation9 + $0x28] sm:$0xf]
      %v387 = vld [vmem:[#allocation9 + $0x2c] sm:$0xf]
      %v388 = vld [vmem:[#allocation9 + $0x30] sm:$0xf]
      %v389 = vld [vmem:[#allocation9 + $0x34] sm:$0xf]
      %v390 = vld [vmem:[#allocation9 + $0x38] sm:$0xf]
      %v391 = vld [vmem:[#allocation9 + $0x3c] sm:$0xf]
      %v392 = vld [vmem:[%s6] sm:$0x1]
      %v394 = vperm.slane %v392, 0
      %v412 = vunpack.c.l.b16 %v376
      %v413 = vunpack.c.l.b16 %v377
      %v414 = vunpack.c.l.b16 %v378
      %v415 = vunpack.c.l.b16 %v379
      %v416 = vunpack.c.l.b16 %v380
      %v417 = vunpack.c.l.b16 %v381
      %v418 = vunpack.c.l.b16 %v382
      %v419 = vunpack.c.l.b16 %v383
      %v420 = vunpack.c.l.b16 %v384
      %v421 = vunpack.c.l.b16 %v385
      %v422 = vunpack.c.l.b16 %v386
      %v423 = vunpack.c.l.b16 %v387
      %v424 = vunpack.c.l.b16 %v388
      %v425 = vunpack.c.l.b16 %v389
      %v426 = vunpack.c.l.b16 %v390
      %v427 = vunpack.c.l.b16 %v391
      %v428 = vpack.c.b16 %v413, %v412
      %v429 = vpack.c.b16 %v415, %v414
      %v430 = vpack.c.b16 %v417, %v416
      %v431 = vpack.c.b16 %v419, %v418
      %v432 = vpack.c.b16 %v421, %v420
      %v433 = vpack.c.b16 %v423, %v422
      %v434 = vpack.c.b16 %v425, %v424
      %v435 = vpack.c.b16 %v427, %v426
      %444 = vmatpush.bf16.msra.mxu0 %v435
      %445 = vmatpush.bf16.msra.mxu0 %v434
      %446 = vmatpush.bf16.msra.mxu0 %v433
      %447 = vmatpush.bf16.msra.mxu0 %v432
      %448 = vmatpush.bf16.msra.mxu0 %v431
      %449 = vmatpush.bf16.msra.mxu0 %v430
      %450 = vmatpush.bf16.msra.mxu0 %v429
      %451 = vmatpush.bf16.msra.mxu0 %v428
      %452 = vmatmul.bf16.gmra.mxu0 %v375
      %v453 = vpop.f32.mrf.mxu0
      %v454 = vadd.f32 %v394, %v453
      %v455 = vpop.f32.mrf.mxu0
      %456 = vdwg.mxu0
      %v457 = vlaneseq
      %v458 = vand.u32 %v457, 127
      %vm459 = vcmp.lt.s32.totalorder %v458, 64
      %v460 = vmul.f32 %v454, 0.5
      %v461 = vmul.f32 %v460, 1.442695
      %v462 = vpow.pop %v461
      %v463 = vsel %vm459, %v454, %v462
      %464 = vst [vmem:[#allocation11] sm:$0xff] %v463
    $region53: #{tpu_custom_call.1} parent=1 // pred_fallthru
      _
    // Predicated region
    $region54: #{tpu_custom_call.1} parent=1 // pred_check
      _
    $region55: #{tpu_custom_call.1} parent=1 // pred_check_branch
      %466 = sbr.rel (0) target = $region57
    $region56: #{tpu_custom_call.1} parent=1 // pred_region
      %468 = vsyncadd [#allocation5], 0
      %s470 = sshll.u32 [#allocation11], 4
      %s471 = int_to_ptr.vmem [resolvable:$true] %s470
      %s472 = sshll.u32 %s7, 4
      %s473 = int_to_ptr.hbm [resolvable:$true] %s472
      %475 = dma.vmem_to_hbm [thread:$0]  %s471, 128, %s473, [#allocation5]
    $region57: #{tpu_custom_call.1} parent=1 // pred_fallthru
      _
    // Predicated region
    $region58: #{tpu_custom_call.1} parent=1 // pred_check
      _
    $region59: #{tpu_custom_call.1} parent=1 // pred_check_branch
      %477 = sbr.rel (0) target = $region61
    $region60: #{tpu_custom_call.1} parent=1 // pred_region
      %479 = dma.done [#allocation5], 128
    $region61: #{tpu_custom_call.1} parent=1 // pred_fallthru
      _
    %480 = vsyncpa [#allocation4], 1
    %481 = vsyncpa [#allocation7], 1
    %482 = vsyncpa [#allocation10], 1
    %483 = vsyncpa [#allocation5], 1

// kernel: tpu_custom_call.1
$region0: #{tpu_custom_call.1}
  #allocation0 [shape = 'u32[]', space=smem, size = 0x4, offset = 0x4, fixed_abs, tag = 'smem constant byte address 0x4 - core index']
  #allocation1 [shape = 'u32[72,128]{1,0:T(1,128)}', space=vmem, size = 0x9000, scoped, tag = 'internal scratch']
  #allocation2 [shape = 'f32[8,128]{1,0:T(8,128)}', space=vmem, size = 0x1000, scoped, tag = 'scratch operand']
  %s0 = inlined_call_operand.hbm [shape: f32[8,256], index: 0, kind: input, shape index: {}]
  %s1 = inlined_call_operand.hbm [shape: bf16[256,128], index: 1, kind: input, shape index: {}]
  %s2 = inlined_call_operand.vmem [shape: f32[1,128], index: 2, kind: input, shape index: {}]
  %s3 = inlined_call_operand.hbm [shape: bf16[128,128], index: 3, kind: input, shape index: {}]
  %s4 = inlined_call_operand.vmem [shape: f32[1,128], index: 4, kind: input, shape index: {}]
  %s5 = inlined_call_operand.hbm [shape: bf16[128,128], index: 5, kind: input, shape index: {}]
  %s6 = inlined_call_operand.vmem [shape: f32[1,128], index: 6, kind: input, shape index: {}]
  %s7 = inlined_call_operand.hbm [shape: f32[8,128], index: 7, kind: output, shape index: {}]
  %s8 = sld [smem:[#allocation0]]
  $region62: #{tpu_custom_call.1} parent=0
    _
  %s10 = ssub.s32 1, %s8
  %s11 = scalar_select 0, %s10, %s8
  $region1: #{tpu_custom_call.1} parent=0
    #allocation3 [shape = 'u8[8192]{0}', space=vmem, size = 0x2000, scoped, tag = 'input window, operand 0, single buffered']
    #allocation4 [shape = 's32[1]{0}', space=sflag, size = 0x4, scoped, tag = 'scoped memory for tpu_custom_call.1']
    #allocation5 [shape = 's32[1]{0}', space=sflag, size = 0x4, scoped, tag = 'scoped memory for tpu_custom_call.1']
    #allocation6 [shape = 'u8[65536]{0}', space=vmem, size = 0x10000, scoped, tag = 'input window, operand 1, single buffered']
    #allocation7 [shape = 's32[1]{0}', space=sflag, size = 0x4, scoped, tag = 'scoped memory for tpu_custom_call.1']
    #allocation8 [shape = 'u8[32768]{0}', space=vmem, size = 0x8000, scoped, tag = 'input window, operand 3, single buffered']
    #allocation9 [shape = 'u8[32768]{0}', space=vmem, size = 0x8000, scoped, tag = 'input window, operand 5, single buffered']
    #allocation10 [shape = 's32[1]{0}', space=sflag, size = 0x4, scoped, tag = 'scoped memory for tpu_custom_call.1']
    #allocation11 [shape = 'u8[4096]{0}', space=vmem, size = 0x1000, scoped, tag = 'output window, operand 0, single buffered']
    %12 = vsyncpa [#allocation4], 0
    %13 = vsyncpa [#allocation7], 0
    %14 = vsyncpa [#allocation10], 0
    %15 = vsyncpa [#allocation5], 0
    // Predicated region
    $region2: #{tpu_custom_call.1} parent=1 // pred_check
      _
    $region3: #{tpu_custom_call.1} parent=1 // pred_check_branch
      %17 = sbr.rel (0) target = $region5
    $region4: #{tpu_custom_call.1} parent=1 // pred_region
      %19 = vsyncadd [#allocation4], 0
      %s21 = sshll.u32 %s0, 4
      %s22 = int_to_ptr.hbm [resolvable:$true] %s21
      %s23 = sshll.u32 [#allocation3], 4
      %s24 = int_to_ptr.vmem [resolvable:$true] %s23
      %26 = dma.hbm_to_vmem [thread:$0]  %s22, 256, %s24, [#allocation4]
    $region5: #{tpu_custom_call.1} parent=1 // pred_fallthru
      _
    // Predicated region
    $region6: #{tpu_custom_call.1} parent=1 // pred_check
      _
    $region7: #{tpu_custom_call.1} parent=1 // pred_check_branch
      %28 = sbr.rel (0) target = $region9
    $region8: #{tpu_custom_call.1} parent=1 // pred_region
      %30 = vsyncadd [#allocation7], 0
      %s31 = sshll.u32 %s1, 4
      %s32 = int_to_ptr.hbm [resolvable:$true] %s31
      %s33 = sshll.u32 [#allocation6], 4
      %s34 = int_to_ptr.vmem [resolvable:$true] %s33
      %39 = dma.hbm_to_vmem [thread:$0]  %s32, 2048, %s34, [#allocation7], 64, 64, 4
    $region9: #{tpu_custom_call.1} parent=1 // pred_fallthru
      _
    // Predicated region
    $region10: #{tpu_custom_call.1} parent=1 // pred_check
      _
    $region11: #{tpu_custom_call.1} parent=1 // pred_check_branch
      %41 = sbr.rel (0) target = $region13
    $region12: #{tpu_custom_call.1} parent=1 // pred_region
      _
    $region13: #{tpu_custom_call.1} parent=1 // pred_fallthru
      _
    // Predicated region
    $region14: #{tpu_custom_call.1} parent=1 // pred_check
      _
    $region15: #{tpu_custom_call.1} parent=1 // pred_check_branch
      %43 = sbr.rel (0) target = $region17
    $region16: #{tpu_custom_call.1} parent=1 // pred_region
      %45 = vsyncadd [#allocation7], 0
      %s46 = sshll.u32 %s3, 4
      %s47 = int_to_ptr.hbm [resolvable:$true] %s46
      %s48 = sshll.u32 [#allocation8], 4
      %s49 = int_to_ptr.vmem [resolvable:$true] %s48
      %54 = dma.hbm_to_vmem [thread:$0]  %s47, 1024, %s49, [#allocation7], 64, 64, 4
    $region17: #{tpu_custom_call.1} parent=1 // pred_fallthru
      _
    // Predicated region
    $region18: #{tpu_custom_call.1} parent=1 // pred_check
      _
    $region19: #{tpu_custom_call.1} parent=1 // pred_check_branch
      %56 = sbr.rel (0) target = $region21
    $region20: #{tpu_custom_call.1} parent=1 // pred_region
      _
    $region21: #{tpu_custom_call.1} parent=1 // pred_fallthru
      _
    // Predicated region
    $region22: #{tpu_custom_call.1} parent=1 // pred_check
      _
    $region23: #{tpu_custom_call.1} parent=1 // pred_check_branch
      %58 = sbr.rel (0) target = $region25
    $region24: #{tpu_custom_call.1} parent=1 // pred_region
      %60 = vsyncadd [#allocation10], 0
      %s61 = sshll.u32 %s5, 4
      %s62 = int_to_ptr.hbm [resolvable:$true] %s61
      %s63 = sshll.u32 [#allocation9], 4
      %s64 = int_to_ptr.vmem [resolvable:$true] %s63
      %69 = dma.hbm_to_vmem [thread:$0]  %s62, 1024, %s64, [#allocation10], 64, 64, 4
    $region25: #{tpu_custom_call.1} parent=1 // pred_fallthru
      _
    // Predicated region
    $region26: #{tpu_custom_call.1} parent=1 // pred_check
      _
    $region27: #{tpu_custom_call.1} parent=1 // pred_check_branch
      %71 = sbr.rel (0) target = $region29
    $region28: #{tpu_custom_call.1} parent=1 // pred_region
      _
    $region29: #{tpu_custom_call.1} parent=1 // pred_fallthru
      _
    // Predicated region
    $region30: #{tpu_custom_call.1} parent=1 // pred_check
      _
    $region31: #{tpu_custom_call.1} parent=1 // pred_check_branch
      %73 = sbr.rel (0) target = $region33
    $region32: #{tpu_custom_call.1} parent=1 // pred_region
      %75 = dma.done [#allocation4], 256
    $region33: #{tpu_custom_call.1} parent=1 // pred_fallthru
      _
    // Predicated region
    $region34: #{tpu_custom_call.1} parent=1 // pred_check
      _
    $region35: #{tpu_custom_call.1} parent=1 // pred_check_branch
      %77 = sbr.rel (0) target = $region37
    $region36: #{tpu_custom_call.1} parent=1 // pred_region
      %79 = dma.done [#allocation7], 2048
    $region37: #{tpu_custom_call.1} parent=1 // pred_fallthru
      _
    // Predicated region
    $region38: #{tpu_custom_call.1} parent=1 // pred_check
      _
    $region39: #{tpu_custom_call.1} parent=1 // pred_check_branch
      %81 = sbr.rel (0) target = $region41
    $region40: #{tpu_custom_call.1} parent=1 // pred_region
      %83 = dma.done [#allocation7], 1024
    $region41: #{tpu_custom_call.1} parent=1 // pred_fallthru
      _
    // Predicated region
    $region42: #{tpu_custom_call.1} parent=1 // pred_check
      _
    $region43: #{tpu_custom_call.1} parent=1 // pred_check_branch
      %85 = sbr.rel (0) target = $region45
    $region44: #{tpu_custom_call.1} parent=1 // pred_region
      %87 = dma.done [#allocation10], 1024
    $region45: #{tpu_custom_call.1} parent=1 // pred_fallthru
      _
    %p88 = scmp.eq.s32.totalorder 0, 0
    // Predicated region
    $region46: #{tpu_custom_call.1} parent=1 // pred_check
      %p89 = pneg %p88
    $region47: #{tpu_custom_call.1} parent=1 // pred_check_branch
      %91 = sbr.rel (%p89) target = $region49
    $region48: #{tpu_custom_call.1} parent=1 // pred_region
      %92 = vst [vmem:[#allocation2] sm:$0xff] 0.0
    $region49: #{tpu_custom_call.1} parent=1 // pred_fallthru
      _
    %v93 = vld [vmem:[#allocation2] sm:$0xff]
    %v94 = vld [vmem:[#allocation3] sm:$0xff]
    %v95 = vld [vmem:[#allocation3 + $0x8] sm:$0xff]
    %v96 = vpack.c.bf16 %v94, %v94
    %v97 = vpack.c.bf16 %v95, %v95
    %v98 = vld [vmem:[#allocation6] sm:$0xf]
    %v99 = vld [vmem:[#allocation6 + $0x4] sm:$0xf]
    %v100 = vld [vmem:[#allocation6 + $0x8] sm:$0xf]
    %v101 = vld [vmem:[#allocation6 + $0xc] sm:$0xf]
    %v102 = vld [vmem:[#allocation6 + $0x10] sm:$0xf]
    %v103 = vld [vmem:[#allocation6 + $0x14] sm:$0xf]
    %v104 = vld [vmem:[#allocation6 + $0x18] sm:$0xf]
    %v105 = vld [vmem:[#allocation6 + $0x1c] sm:$0xf]
    %v106 = vld [vmem:[#allocation6 + $0x20] sm:$0xf]
    %v107 = vld [vmem:[#allocation6 + $0x24] sm:$0xf]
    %v108 = vld [vmem:[#allocation6 + $0x28] sm:$0xf]
    %v109 = vld [vmem:[#allocation6 + $0x2c] sm:$0xf]
    %v110 = vld [vmem:[#allocation6 + $0x30] sm:$0xf]
    %v111 = vld [vmem:[#allocation6 + $0x34] sm:$0xf]
    %v112 = vld [vmem:[#allocation6 + $0x38] sm:$0xf]
    %v113 = vld [vmem:[#allocation6 + $0x3c] sm:$0xf]
    %v114 = vld [vmem:[#allocation6 + $0x40] sm:$0xf]
    %v115 = vld [vmem:[#allocation6 + $0x44] sm:$0xf]
    %v116 = vld [vmem:[#allocation6 + $0x48] sm:$0xf]
    %v117 = vld [vmem:[#allocation6 + $0x4c] sm:$0xf]
    %v118 = vld [vmem:[#allocation6 + $0x50] sm:$0xf]
    %v119 = vld [vmem:[#allocation6 + $0x54] sm:$0xf]
    %v120 = vld [vmem:[#allocation6 + $0x58] sm:$0xf]
    %v121 = vld [vmem:[#allocation6 + $0x5c] sm:$0xf]
    %v122 = vld [vmem:[#allocation6 + $0x60] sm:$0xf]
    %v123 = vld [vmem:[#allocation6 + $0x64] sm:$0xf]
    %v124 = vld [vmem:[#allocation6 + $0x68] sm:$0xf]
    %v125 = vld [vmem:[#allocation6 + $0x6c] sm:$0xf]
    %v126 = vld [vmem:[#allocation6 + $0x70] sm:$0xf]
    %v127 = vld [vmem:[#allocation6 + $0x74] sm:$0xf]
    %v128 = vld [vmem:[#allocation6 + $0x78] sm:$0xf]
    %v129 = vld [vmem:[#allocation6 + $0x7c] sm:$0xf]
    %v162 = vunpack.c.l.b16 %v98
    %v163 = vunpack.c.l.b16 %v99
    %v164 = vunpack.c.l.b16 %v100
    %v165 = vunpack.c.l.b16 %v101
    %v166 = vunpack.c.l.b16 %v102
    %v167 = vunpack.c.l.b16 %v103
    %v168 = vunpack.c.l.b16 %v104
    %v169 = vunpack.c.l.b16 %v105
    %v170 = vunpack.c.l.b16 %v106
    %v171 = vunpack.c.l.b16 %v107
    %v172 = vunpack.c.l.b16 %v108
    %v173 = vunpack.c.l.b16 %v109
    %v174 = vunpack.c.l.b16 %v110
    %v175 = vunpack.c.l.b16 %v111
    %v176 = vunpack.c.l.b16 %v112
    %v177 = vunpack.c.l.b16 %v113
    %v178 = vunpack.c.l.b16 %v114
    %v179 = vunpack.c.l.b16 %v115
    %v180 = vunpack.c.l.b16 %v116
    %v181 = vunpack.c.l.b16 %v117
    %v182 = vunpack.c.l.b16 %v118
    %v183 = vunpack.c.l.b16 %v119
    %v184 = vunpack.c.l.b16 %v120
    %v185 = vunpack.c.l.b16 %v121
    %v186 = vunpack.c.l.b16 %v122
    %v187 = vunpack.c.l.b16 %v123
    %v188 = vunpack.c.l.b16 %v124
    %v189 = vunpack.c.l.b16 %v125
    %v190 = vunpack.c.l.b16 %v126
    %v191 = vunpack.c.l.b16 %v127
    %v192 = vunpack.c.l.b16 %v128
    %v193 = vunpack.c.l.b16 %v129
    %v194 = vpack.c.b16 %v163, %v162
    %v195 = vpack.c.b16 %v165, %v164
    %v196 = vpack.c.b16 %v167, %v166
    %v197 = vpack.c.b16 %v169, %v168
    %v198 = vpack.c.b16 %v171, %v170
    %v199 = vpack.c.b16 %v173, %v172
    %v200 = vpack.c.b16 %v175, %v174
    %v201 = vpack.c.b16 %v177, %v176
    %v202 = vpack.c.b16 %v179, %v178
    %v203 = vpack.c.b16 %v181, %v180
    %v204 = vpack.c.b16 %v183, %v182
    %v205 = vpack.c.b16 %v185, %v184
    %v206 = vpack.c.b16 %v187, %v186
    %v207 = vpack.c.b16 %v189, %v188
    %v208 = vpack.c.b16 %v191, %v190
    %v209 = vpack.c.b16 %v193, %v192
    %226 = vmatpush.bf16.msra.mxu0 %v201
    %227 = vmatpush.bf16.msra.mxu0 %v200
    %228 = vmatpush.bf16.msra.mxu0 %v199
    %229 = vmatpush.bf16.msra.mxu0 %v198
    %230 = vmatpush.bf16.msra.mxu0 %v197
    %231 = vmatpush.bf16.msra.mxu0 %v196
    %232 = vmatpush.bf16.msra.mxu0 %v195
    %233 = vmatpush.bf16.msra.mxu0 %v194
    %234 = vmatmul.bf16.gmra.mxu0 %v96
    %v235 = vpop.f32.mrf.mxu0
    %v236 = vadd.f32 0.0, %v235
    %v237 = vpop.f32.mrf.mxu0
    %238 = vdwg.mxu0
    %239 = vmatpush.bf16.msra.mxu0 %v209
    %240 = vmatpush.bf16.msra.mxu0 %v208
    %241 = vmatpush.bf16.msra.mxu0 %v207
    %242 = vmatpush.bf16.msra.mxu0 %v206
    %243 = vmatpush.bf16.msra.mxu0 %v205
    %244 = vmatpush.bf16.msra.mxu0 %v204
    %245 = vmatpush.bf16.msra.mxu0 %v203
    %246 = vmatpush.bf16.msra.mxu0 %v202
    %247 = vmatmul.bf16.gmra.mxu0 %v97
    %v248 = vpop.f32.mrf.mxu0
    %v249 = vadd.f32 %v236, %v248
    %v250 = vpop.f32.mrf.mxu0
    %251 = vdwg.mxu0
    %v252 = vadd.f32 %v93, %v249
    %253 = vst [vmem:[#allocation2] sm:$0xff] %v252
    // Predicated region
    $region50: #{tpu_custom_call.1} parent=1 // pred_check
      %p254 = pneg %p88
    $region51: #{tpu_custom_call.1} parent=1 // pred_check_branch
      %256 = sbr.rel (%p254) target = $region53
    $region52: #{tpu_custom_call.1} parent=1 // pred_region
      %v257 = vld [vmem:[#allocation2] sm:$0xff]
      %v258 = vld [vmem:[%s2] sm:$0x1]
      %v260 = vperm.slane %v258, 0
      %v262 = vadd.f32 %v257, %v260
      %v263 = vmax.f32 %v262, 0.0
      %v264 = vand.u32 2147483647, %v262
      %v265 = vsub.f32 0.0, %v264
      %v266 = vmul.f32 %v265, 1.442695
      %v267 = vpow.pop %v266
      %v268 = vadd.f32 %v267, 1.0
      %v269 = vlog2.pop %v268
      %v270 = vmul.f32 %v269, 0.6931472
      %v271 = vmul.f32 -0.5, %v267
      %v272 = vadd.f32 %v271, 1.0
      %v273 = vmul.f32 %v272, %v267
      %v274 = vand.u32 2147483647, %v267
      %vm275 = vcmp.lt.f32.partialorder %v274, 0.0004427343
      %v276 = vsel %vm275, %v273, %v270
      %v277 = vadd.f32 %v263, %v276
      %v278 = vpack.c.bf16 %v277, %v277
      %v279 = vld [vmem:[#allocation8] sm:$0xf]
      %v280 = vld [vmem:[#allocation8 + $0x4] sm:$0xf]
      %v281 = vld [vmem:[#allocation8 + $0x8] sm:$0xf]
      %v282 = vld [vmem:[#allocation8 + $0xc] sm:$0xf]
      %v283 = vld [vmem:[#allocation8 + $0x10] sm:$0xf]
      %v284 = vld [vmem:[#allocation8 + $0x14] sm:$0xf]
      %v285 = vld [vmem:[#allocation8 + $0x18] sm:$0xf]
      %v286 = vld [vmem:[#allocation8 + $0x1c] sm:$0xf]
      %v287 = vld [vmem:[#allocation8 + $0x20] sm:$0xf]
      %v288 = vld [vmem:[#allocation8 + $0x24] sm:$0xf]
      %v289 = vld [vmem:[#allocation8 + $0x28] sm:$0xf]
      %v290 = vld [vmem:[#allocation8 + $0x2c] sm:$0xf]
      %v291 = vld [vmem:[#allocation8 + $0x30] sm:$0xf]
      %v292 = vld [vmem:[#allocation8 + $0x34] sm:$0xf]
      %v293 = vld [vmem:[#allocation8 + $0x38] sm:$0xf]
      %v294 = vld [vmem:[#allocation8 + $0x3c] sm:$0xf]
      %v295 = vld [vmem:[%s4] sm:$0x1]
      %v297 = vperm.slane %v295, 0
      %v315 = vunpack.c.l.b16 %v279
      %v316 = vunpack.c.l.b16 %v280
      %v317 = vunpack.c.l.b16 %v281
      %v318 = vunpack.c.l.b16 %v282
      %v319 = vunpack.c.l.b16 %v283
      %v320 = vunpack.c.l.b16 %v284
      %v321 = vunpack.c.l.b16 %v285
      %v322 = vunpack.c.l.b16 %v286
      %v323 = vunpack.c.l.b16 %v287
      %v324 = vunpack.c.l.b16 %v288
      %v325 = vunpack.c.l.b16 %v289
      %v326 = vunpack.c.l.b16 %v290
      %v327 = vunpack.c.l.b16 %v291
      %v328 = vunpack.c.l.b16 %v292
      %v329 = vunpack.c.l.b16 %v293
      %v330 = vunpack.c.l.b16 %v294
      %v331 = vpack.c.b16 %v316, %v315
      %v332 = vpack.c.b16 %v318, %v317
      %v333 = vpack.c.b16 %v320, %v319
      %v334 = vpack.c.b16 %v322, %v321
      %v335 = vpack.c.b16 %v324, %v323
      %v336 = vpack.c.b16 %v326, %v325
      %v337 = vpack.c.b16 %v328, %v327
      %v338 = vpack.c.b16 %v330, %v329
      %347 = vmatpush.bf16.msra.mxu0 %v338
      %348 = vmatpush.bf16.msra.mxu0 %v337
      %349 = vmatpush.bf16.msra.mxu0 %v336
      %350 = vmatpush.bf16.msra.mxu0 %v335
      %351 = vmatpush.bf16.msra.mxu0 %v334
      %352 = vmatpush.bf16.msra.mxu0 %v333
      %353 = vmatpush.bf16.msra.mxu0 %v332
      %354 = vmatpush.bf16.msra.mxu0 %v331
      %355 = vmatmul.bf16.gmra.mxu0 %v278
      %v356 = vpop.f32.mrf.mxu0
      %v357 = vadd.f32 %v297, %v356
      %v358 = vpop.f32.mrf.mxu0
      %359 = vdwg.mxu0
      %v360 = vmax.f32 %v357, 0.0
      %v361 = vand.u32 2147483647, %v357
      %v362 = vsub.f32 0.0, %v361
      %v363 = vmul.f32 %v362, 1.442695
      %v364 = vpow.pop %v363
      %v365 = vadd.f32 %v364, 1.0
      %v366 = vlog2.pop %v365
      %v367 = vmul.f32 %v366, 0.6931472
      %v368 = vmul.f32 -0.5, %v364
      %v369 = vadd.f32 %v368, 1.0
      %v370 = vmul.f32 %v369, %v364
      %v371 = vand.u32 2147483647, %v364
      %vm372 = vcmp.lt.f32.partialorder %v371, 0.0004427343
      %v373 = vsel %vm372, %v370, %v367
      %v374 = vadd.f32 %v360, %v373
      %v375 = vpack.c.bf16 %v374, %v374
      %v376 = vld [vmem:[#allocation9] sm:$0xf]
      %v377 = vld [vmem:[#allocation9 + $0x4] sm:$0xf]
      %v378 = vld [vmem:[#allocation9 + $0x8] sm:$0xf]
      %v379 = vld [vmem:[#allocation9 + $0xc] sm:$0xf]
      %v380 = vld [vmem:[#allocation9 + $0x10] sm:$0xf]
      %v381 = vld [vmem:[#allocation9 + $0x14] sm:$0xf]
      %v382 = vld [vmem:[#allocation9 + $0x18] sm:$0xf]
      %v383 = vld [vmem:[#allocation9 + $0x1c] sm:$0xf]
      %v384 = vld [vmem:[#allocation9 + $0x20] sm:$0xf]
      %v385 = vld [vmem:[#allocation9 + $0x24] sm:$0xf]
      %v386 = vld [vmem:[#allocation9 + $0x28] sm:$0xf]
      %v387 = vld [vmem:[#allocation9 + $0x2c] sm:$0xf]
      %v388 = vld [vmem:[#allocation9 + $0x30] sm:$0xf]
      %v389 = vld [vmem:[#allocation9 + $0x34] sm:$0xf]
      %v390 = vld [vmem:[#allocation9 + $0x38] sm:$0xf]
      %v391 = vld [vmem:[#allocation9 + $0x3c] sm:$0xf]
      %v392 = vld [vmem:[%s6] sm:$0x1]
      %v394 = vperm.slane %v392, 0
      %v412 = vunpack.c.l.b16 %v376
      %v413 = vunpack.c.l.b16 %v377
      %v414 = vunpack.c.l.b16 %v378
      %v415 = vunpack.c.l.b16 %v379
      %v416 = vunpack.c.l.b16 %v380
      %v417 = vunpack.c.l.b16 %v381
      %v418 = vunpack.c.l.b16 %v382
      %v419 = vunpack.c.l.b16 %v383
      %v420 = vunpack.c.l.b16 %v384
      %v421 = vunpack.c.l.b16 %v385
      %v422 = vunpack.c.l.b16 %v386
      %v423 = vunpack.c.l.b16 %v387
      %v424 = vunpack.c.l.b16 %v388
      %v425 = vunpack.c.l.b16 %v389
      %v426 = vunpack.c.l.b16 %v390
      %v427 = vunpack.c.l.b16 %v391
      %v428 = vpack.c.b16 %v413, %v412
      %v429 = vpack.c.b16 %v415, %v414
      %v430 = vpack.c.b16 %v417, %v416
      %v431 = vpack.c.b16 %v419, %v418
      %v432 = vpack.c.b16 %v421, %v420
      %v433 = vpack.c.b16 %v423, %v422
      %v434 = vpack.c.b16 %v425, %v424
      %v435 = vpack.c.b16 %v427, %v426
      %444 = vmatpush.bf16.msra.mxu0 %v435
      %445 = vmatpush.bf16.msra.mxu0 %v434
      %446 = vmatpush.bf16.msra.mxu0 %v433
      %447 = vmatpush.bf16.msra.mxu0 %v432
      %448 = vmatpush.bf16.msra.mxu0 %v431
      %449 = vmatpush.bf16.msra.mxu0 %v430
      %450 = vmatpush.bf16.msra.mxu0 %v429
      %451 = vmatpush.bf16.msra.mxu0 %v428
      %452 = vmatmul.bf16.gmra.mxu0 %v375
      %v453 = vpop.f32.mrf.mxu0
      %v454 = vadd.f32 %v394, %v453
      %v455 = vpop.f32.mrf.mxu0
      %456 = vdwg.mxu0
      %v457 = vlaneseq
      %v458 = vand.u32 %v457, 127
      %vm459 = vcmp.lt.s32.totalorder %v458, 64
      %v460 = vmul.f32 %v454, 0.5
      %v461 = vmul.f32 %v460, 1.442695
      %v462 = vpow.pop %v461
      %v463 = vsel %vm459, %v454, %v462
      %464 = vst [vmem:[#allocation11] sm:$0xff] %v463
    $region53: #{tpu_custom_call.1} parent=1 // pred_fallthru
      _
    // Predicated region
    $region54: #{tpu_custom_call.1} parent=1 // pred_check
      _
    $region55: #{tpu_custom_call.1} parent=1 // pred_check_branch
      %466 = sbr.rel (0) target = $region57
    $region56: #{tpu_custom_call.1} parent=1 // pred_region
      %468 = vsyncadd [#allocation5], 0
      %s470 = sshll.u32 [#allocation11], 4
      %s471 = int_to_ptr.vmem [resolvable:$true] %s470
      %s472 = sshll.u32 %s7, 4
      %s473 = int_to_ptr.hbm [resolvable:$true] %s472
      %475 = dma.vmem_to_hbm [thread:$0]  %s471, 128, %s473, [#allocation5]
    $region57: #{tpu_custom_call.1} parent=1 // pred_fallthru
      _
    // Predicated region
    $region58: #{tpu_custom_call.1} parent=1 // pred_check
      _
    $region59: #{tpu_custom_call.1} parent=1 // pred_check_branch
      %477 = sbr.rel (0) target = $region61
    $region60: #{tpu_custom_call.1} parent=1 // pred_region
      %479 = dma.done [#allocation5], 128
    $region61: #{tpu_custom_call.1} parent=1 // pred_fallthru
      _
    %480 = vsyncpa [#allocation4], 1
    %481 = vsyncpa [#allocation7], 1
    %482 = vsyncpa [#allocation10], 1
    %483 = vsyncpa [#allocation5], 1

</llo_original>
